<compile_context>
chip_gen: v7x
topology: tpu7x:2x2x1
jax: 0.10.0
libtpu: 0.0.40
codegen_flags: <defaults>
</compile_context>

<pallas_src>
import functools

import jax
import jax.numpy as jnp
from jax import lax
from jax.experimental import pallas as pl
from jax.experimental.pallas import tpu as pltpu

ALPHA = 1.0
GAMMA = 2
SIZE_AVERAGE = True

_LANES = 128
_MAX_TILE_ROWS = 8192  # 4 MiB f32 per input block


def _focal_sum_kernel(x_ref, t_ref, out_ref, *, alpha, gamma, hard_targets,
                      steps_per_core, tile_rows, first_masked_block,
                      tail_rem, has_tail):
    c = pl.program_id(0)          # core / partial-sum slot (parallel)
    i = pl.program_id(1)          # reduction step (arbitrary)
    tile_elems = tile_rows * _LANES

    @pl.when(i == 0)
    def _():
        out_ref[...] = jnp.zeros_like(out_ref)

    x = x_ref[...].astype(jnp.float32)   # upcast only if inputs are narrow
    t = t_ref[...].astype(jnp.float32)

    # Numerically stable BCE-with-logits (reduction='none').
    e = jnp.exp(-jnp.abs(x))
    bce = jnp.maximum(x, 0.0) - x * t + jnp.log1p(e)

    if hard_targets:
        # For t in {0,1}: exp(-bce) == select(...) / (1 + e); reuses e and
        # saves one EUP exp per element. Exact division keeps 1e-5/1e-6 tol.
        num = jnp.where(t > 0.5,
                        jnp.where(x >= 0.0, 1.0, e),
                        jnp.where(x >= 0.0, e, 1.0))
        pt = num / (1.0 + e)
    else:
        pt = jnp.exp(-bce)

    q = 1.0 - pt
    if isinstance(gamma, int):
        w = q * q if gamma == 2 else lax.integer_pow(q, gamma)
    else:
        w = q ** gamma
    f_loss = w * bce
    if alpha != 1.0:
        f_loss = alpha * f_loss

    def fold(v):
        # Fold the tile into the resident (8, 128) accumulator block: pure
        # vreg-wise VPU adds; the cross-lane reduce is done in the wrapper.
        out_ref[0] += v.reshape(tile_rows // 8, 8, _LANES).sum(axis=0)

    if has_tail:
        # Nominal global block index of this grid slot.
        gb = c * steps_per_core + i
        needs_mask = gb >= first_masked_block

        @pl.when(jnp.logical_not(needs_mask))
        def _():
            fold(f_loss)

        @pl.when(needs_mask)
        def _():
            # Remaining valid elements in this block. int32-safe: both terms
            # stay below a few * tile_elems regardless of total input size.
            rem = (jnp.int32(tail_rem)
                   - (gb - first_masked_block) * jnp.int32(tile_elems))
            lidx = (lax.broadcasted_iota(jnp.int32, f_loss.shape, 0) * _LANES
                    + lax.broadcasted_iota(jnp.int32, f_loss.shape, 1))
            fold(jnp.where(lidx < rem, f_loss, 0.0))
    else:
        fold(f_loss)


def binary_focal_loss(inputs, targets, *, alpha=ALPHA, gamma=GAMMA,
                      size_average=SIZE_AVERAGE, hard_targets=False):
    assert inputs.shape == targets.shape
    n_valid = int(inputs.size)

    x = inputs.reshape(-1)
    t = targets.reshape(-1)

    # Lane-dense (rows, 128) layout. Fast path: no pad (no HBM copy) when the
    # element count is already a multiple of 8*128. Otherwise pad minimally to
    # the next (8, 128) tile boundary; the in-kernel mask zeroes the pad.
    unit = 8 * _LANES
    if n_valid % unit == 0:
        padded = n_valid
    else:
        padded = pl.cdiv(n_valid, unit) * unit
        x = jnp.pad(x, (0, padded - n_valid))
        t = jnp.pad(t, (0, padded - n_valid))
    rows = padded // _LANES                       # multiple of 8, >= 8
    x2 = x.reshape(rows, _LANES)
    t2 = t.reshape(rows, _LANES)

    tile_rows = min(_MAX_TILE_ROWS, rows)         # multiple of 8
    tile_elems = tile_rows * _LANES
    total_blocks = pl.cdiv(rows, tile_rows)

    # Split the block range over 2 partial-sum slots so v7x's two TensorCores
    # both work (serial, near-free on single-TC v5e/v6e).
    num_cores = 2 if total_blocks >= 2 else 1
    steps_per_core = pl.cdiv(total_blocks, num_cores)
    total_slots = num_cores * steps_per_core

    has_tail = (total_slots * tile_elems) != n_valid
    first_masked_block = n_valid // tile_elems
    tail_rem = n_valid - first_masked_block * tile_elems

    if total_slots == total_blocks:
        def row_map(c, i):
            return (c * steps_per_core + i, 0)
    else:
        last_block = total_blocks - 1

        def row_map(c, i):
            # Clamp overshoot slots onto the last real block; their (garbage)
            # contribution is fully masked in-kernel.
            return (jnp.minimum(c * steps_per_core + i, last_block), 0)

    tile_spec = pl.BlockSpec((tile_rows, _LANES), row_map)
    out_spec = pl.BlockSpec((1, 8, _LANES), lambda c, i: (c, 0, 0))

    kernel = functools.partial(
        _focal_sum_kernel,
        alpha=float(alpha), gamma=gamma, hard_targets=hard_targets,
        steps_per_core=steps_per_core, tile_rows=tile_rows,
        first_masked_block=first_masked_block, tail_rem=tail_rem,
        has_tail=has_tail)

    # VMEM budget: two double-buffered input streams + tiny resident output
    # accumulator; explicit limit so large tiles don't trip the default
    # scoped limit (esp. v5e's 16 MiB), while staying well under v7x's 64 MiB.
    buf_bytes = 2 * tile_rows * _LANES * (x2.dtype.itemsize + t2.dtype.itemsize)
    vmem_limit = min(48 * 1024 * 1024, max(16 * 1024 * 1024,
                                           buf_bytes + (4 << 20)))

    partials = pl.pallas_call(
        kernel,
        out_shape=jax.ShapeDtypeStruct((num_cores, 8, _LANES), jnp.float32),
        grid_spec=pltpu.PrefetchScalarGridSpec(
            num_scalar_prefetch=0,
            grid=(num_cores, steps_per_core),
            in_specs=[tile_spec, tile_spec],
            out_specs=out_spec),
        compiler_params=pltpu.CompilerParams(
            dimension_semantics=("parallel", "arbitrary"),
            vmem_limit_bytes=vmem_limit),
    )(x2, t2)

    total = jnp.sum(partials)
    if size_average:
        return total / jnp.float32(n_valid)
    return total


if __name__ == "__main__":
    key = jax.random.PRNGKey(0)
    k1, k2 = jax.random.split(key)
    # NCHW logits + binary targets (batch=2, channels=4, spatial=16x16).
    inputs = jax.random.normal(k1, (2, 4, 16, 16), dtype=jnp.float32)
    targets = jax.random.bernoulli(k2, 0.5, (2, 4, 16, 16)).astype(jnp.float32)

    out = binary_focal_loss(inputs, targets)                      # exact path
    out_hard = binary_focal_loss(inputs, targets, hard_targets=True)
    out = jax.block_until_ready(out)
    out_hard = jax.block_until_ready(out_hard)

    # Pure-JAX reference.
    bce = (jnp.maximum(inputs, 0.0) - inputs * targets
           + jnp.log1p(jnp.exp(-jnp.abs(inputs))))
    pt = jnp.exp(-bce)
    ref = jnp.mean(ALPHA * (1.0 - pt) ** GAMMA * bce)

    assert jnp.allclose(out, ref, rtol=1e-5, atol=1e-6), (out, ref)
    assert jnp.allclose(out_hard, ref, rtol=1e-5, atol=1e-6), (out_hard, ref)
    print("KERNEL_OK")
</pallas_src>

<mosaic_0001>
module attributes {stable_mosaic.version = 11 : i64} {
  func.func @_focal_sum_kernel(%arg0: i32, %arg1: i32, %arg2: memref<16x128xf32, #tpu.memory_space<vmem>>, %arg3: memref<16x128xf32, #tpu.memory_space<vmem>>, %arg4: memref<1x8x128xf32, #tpu.memory_space<vmem>>) attributes {dimension_semantics = [#tpu.dimension_semantics<parallel>, #tpu.dimension_semantics<arbitrary>], iteration_bounds = array<i64: 1, 1>, scalar_prefetch = 0 : i64, scratch_operands = 0 : i64, tpu.core_type = #tpu.core_type<tc>, window_params = [{transform_indices = @transform_0, window_bounds = array<i64: 16, 128>}, {transform_indices = @transform_1, window_bounds = array<i64: 16, 128>}, {transform_indices = @transform_2, window_bounds = array<i64: 1, 8, 128>}]} {
    %c0_i32 = arith.constant 0 : i32
    %0 = arith.cmpi eq, %arg1, %c0_i32 : i32
    %1 = arith.extui %0 : i1 to i32
    %c0_i32_0 = arith.constant 0 : i32
    %2 = arith.cmpi ne, %1, %c0_i32_0 : i32
    scf.if %2 {
      %cst_14 = arith.constant 0.000000e+00 : f32
      %30 = vector.broadcast %cst_14 : f32 to vector<1x8x128xf32>
      %c0_15 = arith.constant 0 : index
      %c0_16 = arith.constant 0 : index
      %c0_17 = arith.constant 0 : index
      %31 = vector.load %arg4[%c0_15, %c0_16, %c0_17] : memref<1x8x128xf32, #tpu.memory_space<vmem>>, vector<1x8x128xf32>
      tpu.vector_store %arg4[%c0_15, %c0_16, %c0_17], %30 {strides = array<i32>} : memref<1x8x128xf32, #tpu.memory_space<vmem>>, vector<1x8x128xf32>,
    } else {
    }
    %c0 = arith.constant 0 : index
    %c0_1 = arith.constant 0 : index
    %3 = vector.load %arg2[%c0, %c0_1] : memref<16x128xf32, #tpu.memory_space<vmem>>, vector<16x128xf32>
    %c0_2 = arith.constant 0 : index
    %c0_3 = arith.constant 0 : index
    %4 = vector.load %arg3[%c0_2, %c0_3] : memref<16x128xf32, #tpu.memory_space<vmem>>, vector<16x128xf32>
    %5 = math.absf %3 : vector<16x128xf32>
    %cst = arith.constant 0.000000e+00 : f32
    %6 = vector.broadcast %cst : f32 to vector<16x128xf32>
    %7 = arith.subf %6, %5 : vector<16x128xf32>
    %8 = math.exp %7 : vector<16x128xf32>
    %cst_4 = arith.constant 0.000000e+00 : f32
    %9 = vector.broadcast %cst_4 : f32 to vector<16x128xf32>
    %10 = arith.maximumf %3, %9 : vector<16x128xf32>
    %11 = arith.mulf %3, %4 : vector<16x128xf32>
    %12 = arith.subf %10, %11 : vector<16x128xf32>
    %13 = math.log1p %8 : vector<16x128xf32>
    %14 = arith.addf %12, %13 : vector<16x128xf32>
    %cst_5 = arith.constant 0.000000e+00 : f32
    %15 = vector.broadcast %cst_5 : f32 to vector<16x128xf32>
    %16 = arith.subf %15, %14 : vector<16x128xf32>
    %17 = math.exp %16 : vector<16x128xf32>
    %cst_6 = arith.constant 1.000000e+00 : f32
    %18 = vector.broadcast %cst_6 : f32 to vector<16x128xf32>
    %19 = arith.subf %18, %17 : vector<16x128xf32>
    %20 = arith.mulf %19, %19 : vector<16x128xf32>
    %21 = arith.mulf %20, %14 : vector<16x128xf32>
    %c0_7 = arith.constant 0 : index
    %c0_8 = arith.constant 0 : index
    %c0_9 = arith.constant 0 : index
    %22 = vector.load %arg4[%c0_7, %c0_8, %c0_9] : memref<1x8x128xf32, #tpu.memory_space<vmem>>, vector<1x8x128xf32>
    %23 = vector.shape_cast %22 : vector<1x8x128xf32> to vector<8x128xf32>
    %24 = vector.shape_cast %21 : vector<16x128xf32> to vector<2x8x128xf32>
    %cst_10 = arith.constant dense<0.000000e+00> : vector<8x128xf32>
    %25 = vector.multi_reduction <add>, %24, %cst_10 [0] : vector<2x8x128xf32> to vector<8x128xf32>
    %26 = arith.addf %23, %25 : vector<8x128xf32>
    %c0_11 = arith.constant 0 : index
    %c0_12 = arith.constant 0 : index
    %c0_13 = arith.constant 0 : index
    %27 = vector.load %arg4[%c0_11, %c0_12, %c0_13] : memref<1x8x128xf32, #tpu.memory_space<vmem>>, vector<1x8x128xf32>
    %28 = vector.shape_cast %27 : vector<1x8x128xf32> to vector<8x128xf32>
    %29 = vector.shape_cast %26 : vector<8x128xf32> to vector<1x8x128xf32>
    tpu.vector_store %arg4[%c0_11, %c0_12, %c0_13], %29 {strides = array<i32>} : memref<1x8x128xf32, #tpu.memory_space<vmem>>, vector<1x8x128xf32>,
    return
  }
  func.func @transform_0(%arg0: i32, %arg1: i32) -> (i32, i32) {
    %c1_i32 = arith.constant 1 : i32
    %0 = arith.muli %arg0, %c1_i32 : i32
    %1 = arith.addi %0, %arg1 : i32
    %c0_i32 = arith.constant 0 : i32
    %c0_i32_0 = arith.constant 0 : i32
    return %1, %c0_i32 : i32, i32
  }
  func.func @transform_1(%arg0: i32, %arg1: i32) -> (i32, i32) {
    %c1_i32 = arith.constant 1 : i32
    %0 = arith.muli %arg0, %c1_i32 : i32
    %1 = arith.addi %0, %arg1 : i32
    %c0_i32 = arith.constant 0 : i32
    %c0_i32_0 = arith.constant 0 : i32
    return %1, %c0_i32 : i32, i32
  }
  func.func @transform_2(%arg0: i32, %arg1: i32) -> (i32, i32, i32) {
    %c0_i32 = arith.constant 0 : i32
    %c0_i32_0 = arith.constant 0 : i32
    %c0_i32_1 = arith.constant 0 : i32
    return %arg0, %c0_i32, %c0_i32_0 : i32, i32, i32
  }
}

</mosaic_0001>

<llo_original>
// kernel: tpu_custom_call.1
$region0: #{tpu_custom_call.1}
  #allocation0 [shape = 'u32[]', space=smem, size = 0x4, offset = 0x4, fixed_abs, tag = 'smem constant byte address 0x4 - core index']
  #allocation1 [shape = 'u32[144,128]{1,0:T(1,128)}', space=vmem, size = 0x12000, scoped, tag = 'internal scratch']
  %s0 = inlined_call_operand.hbm [shape: f32[16,128], index: 0, kind: input, shape index: {}]
  %s1 = inlined_call_operand.hbm [shape: f32[16,128], index: 1, kind: input, shape index: {}]
  %s2 = inlined_call_operand.hbm [shape: f32[1,8,128], index: 2, kind: output, shape index: {}]
  %s3 = sld [smem:[#allocation0]]
  $region30: #{tpu_custom_call.1} parent=0
    _
  %s5 = ssub.s32 1, %s3
  %s6 = scalar_select 0, %s5, %s3
  $region1: #{tpu_custom_call.1} parent=0
    #allocation2 [shape = 'u8[8192]{0}', space=vmem, size = 0x2000, scoped, tag = 'input window, operand 0, single buffered']
    #allocation3 [shape = 's32[1]{0}', space=sflag, size = 0x4, scoped, tag = 'scoped memory for tpu_custom_call.1']
    #allocation4 [shape = 's32[1]{0}', space=sflag, size = 0x4, scoped, tag = 'scoped memory for tpu_custom_call.1']
    #allocation5 [shape = 'u8[8192]{0}', space=vmem, size = 0x2000, scoped, tag = 'input window, operand 1, single buffered']
    #allocation6 [shape = 's32[1]{0}', space=sflag, size = 0x4, scoped, tag = 'scoped memory for tpu_custom_call.1']
    #allocation7 [shape = 'u8[4096]{0}', space=vmem, size = 0x1000, scoped, tag = 'output window, operand 0, single buffered']
    %7 = vsyncpa [#allocation3], 0
    %8 = vsyncpa [#allocation6], 0
    %9 = vsyncpa [#allocation4], 0
    // Predicated region
    $region2: #{tpu_custom_call.1} parent=1 // pred_check
      _
    $region3: #{tpu_custom_call.1} parent=1 // pred_check_branch
      %11 = sbr.rel (0) target = $region5
    $region4: #{tpu_custom_call.1} parent=1 // pred_region
      %s12 = sadd.s32 0, 0
      %s13 = smul.u32 2, %s12
      %s15 = ssub.s32 256, 256
      %16 = vsyncadd [#allocation3], %s15
      %s17 = smul.addr %s13, 128
      %s18 = scalar_lea.hbm %s0, %s17
      %s19 = sshll.u32 [#allocation2], 4
      %s20 = int_to_ptr.vmem [resolvable:$true] %s19
      %25 = dma.hbm_to_vmem [thread:$0]  %s18, 256, %s20, [#allocation3], 128, 128, 8
    $region5: #{tpu_custom_call.1} parent=1 // pred_fallthru
      _
    // Predicated region
    $region6: #{tpu_custom_call.1} parent=1 // pred_check
      _
    $region7: #{tpu_custom_call.1} parent=1 // pred_check_branch
      %27 = sbr.rel (0) target = $region9
    $region8: #{tpu_custom_call.1} parent=1 // pred_region
      %s28 = sadd.s32 0, 0
      %s29 = smul.u32 2, %s28
      %s31 = ssub.s32 256, 256
      %32 = vsyncadd [#allocation6], %s31
      %s33 = smul.addr %s29, 128
      %s34 = scalar_lea.hbm %s1, %s33
      %s35 = sshll.u32 [#allocation5], 4
      %s36 = int_to_ptr.vmem [resolvable:$true] %s35
      %41 = dma.hbm_to_vmem [thread:$0]  %s34, 256, %s36, [#allocation6], 128, 128, 8
    $region9: #{tpu_custom_call.1} parent=1 // pred_fallthru
      _
    // Predicated region
    $region10: #{tpu_custom_call.1} parent=1 // pred_check
      _
    $region11: #{tpu_custom_call.1} parent=1 // pred_check_branch
      %43 = sbr.rel (0) target = $region13
    $region12: #{tpu_custom_call.1} parent=1 // pred_region
      %44 = dma.done [#allocation3], 256
    $region13: #{tpu_custom_call.1} parent=1 // pred_fallthru
      _
    // Predicated region
    $region14: #{tpu_custom_call.1} parent=1 // pred_check
      _
    $region15: #{tpu_custom_call.1} parent=1 // pred_check_branch
      %46 = sbr.rel (0) target = $region17
    $region16: #{tpu_custom_call.1} parent=1 // pred_region
      %47 = dma.done [#allocation6], 256
    $region17: #{tpu_custom_call.1} parent=1 // pred_fallthru
      _
    %s48 = sadd.s32 0, 0
    %s49 = smul.u32 2, %s48
    %s50 = sadd.s32 0, 0
    %s51 = smul.u32 2, %s50
    %p52 = scmp.eq.s32.totalorder 0, 0
    // Predicated region
    $region18: #{tpu_custom_call.1} parent=1 // pred_check
      %p53 = pneg %p52
    $region19: #{tpu_custom_call.1} parent=1 // pred_check_branch
      %55 = sbr.rel (%p53) target = $region21
    $region20: #{tpu_custom_call.1} parent=1 // pred_region
      %56 = vst [vmem:[#allocation7] sm:$0xff] 0.0
    $region21: #{tpu_custom_call.1} parent=1 // pred_fallthru
      _
    %v57 = vld [vmem:[#allocation2] sm:$0xff]
    %v58 = vld [vmem:[#allocation2 + $0x8] sm:$0xff]
    %v59 = vld [vmem:[#allocation5] sm:$0xff]
    %v60 = vld [vmem:[#allocation5 + $0x8] sm:$0xff]
    %v61 = vand.u32 2147483647, %v57
    %v62 = vand.u32 2147483647, %v58
    %v63 = vsub.f32 0.0, %v61
    %v64 = vsub.f32 0.0, %v62
    %v65 = vmul.f32 %v63, 1.442695
    %v66 = vpow.pop %v65
    %v67 = vmul.f32 %v64, 1.442695
    %v68 = vpow.pop %v67
    %v69 = vmax.f32 %v57, 0.0
    %v70 = vmax.f32 %v58, 0.0
    %v71 = vmul.f32 %v57, %v59
    %v72 = vmul.f32 %v58, %v60
    %v73 = vsub.f32 %v69, %v71
    %v74 = vsub.f32 %v70, %v72
    %v75 = vadd.f32 %v66, 1.0
    %v76 = vlog2.pop %v75
    %v77 = vmul.f32 %v76, 0.6931472
    %v78 = vmul.f32 -0.5, %v66
    %v79 = vadd.f32 %v78, 1.0
    %v80 = vmul.f32 %v79, %v66
    %v81 = vand.u32 2147483647, %v66
    %vm82 = vcmp.lt.f32.partialorder %v81, 0.0004427343
    %v83 = vsel %vm82, %v80, %v77
    %v84 = vadd.f32 %v68, 1.0
    %v85 = vlog2.pop %v84
    %v86 = vmul.f32 %v85, 0.6931472
    %v87 = vmul.f32 -0.5, %v68
    %v88 = vadd.f32 %v87, 1.0
    %v89 = vmul.f32 %v88, %v68
    %v90 = vand.u32 2147483647, %v68
    %vm91 = vcmp.lt.f32.partialorder %v90, 0.0004427343
    %v92 = vsel %vm91, %v89, %v86
    %v93 = vadd.f32 %v73, %v83
    %v94 = vadd.f32 %v74, %v92
    %v95 = vsub.f32 0.0, %v93
    %v96 = vsub.f32 0.0, %v94
    %v97 = vmul.f32 %v95, 1.442695
    %v98 = vpow.pop %v97
    %v99 = vmul.f32 %v96, 1.442695
    %v100 = vpow.pop %v99
    %v101 = vsub.f32 1.0, %v98
    %v102 = vsub.f32 1.0, %v100
    %v103 = vmul.f32 %v101, %v101
    %v104 = vmul.f32 %v102, %v102
    %v105 = vmul.f32 %v103, %v93
    %v106 = vmul.f32 %v104, %v94
    %v107 = vld [vmem:[#allocation7] sm:$0xff]
    %v108 = vadd.f32 %v105, %v106
    %v109 = vadd.f32 %v107, %v108
    %110 = vst [vmem:[#allocation7] sm:$0xff] %v109
    // Predicated region
    $region22: #{tpu_custom_call.1} parent=1 // pred_check
      _
    $region23: #{tpu_custom_call.1} parent=1 // pred_check_branch
      %112 = sbr.rel (0) target = $region25
    $region24: #{tpu_custom_call.1} parent=1 // pred_region
      %s114 = ssub.s32 128, 128
      %115 = vsyncadd [#allocation4], %s114
      %s117 = sshll.u32 [#allocation7], 4
      %s118 = int_to_ptr.vmem [resolvable:$true] %s117
      %120 = dma.vmem_to_hbm [thread:$0]  %s118, 128, %s2, [#allocation4]
    $region25: #{tpu_custom_call.1} parent=1 // pred_fallthru
      _
    // Predicated region
    $region26: #{tpu_custom_call.1} parent=1 // pred_check
      _
    $region27: #{tpu_custom_call.1} parent=1 // pred_check_branch
      %122 = sbr.rel (0) target = $region29
    $region28: #{tpu_custom_call.1} parent=1 // pred_region
      %123 = dma.done [#allocation4], 128
    $region29: #{tpu_custom_call.1} parent=1 // pred_fallthru
      _
    %124 = vsyncpa [#allocation3], 1
    %125 = vsyncpa [#allocation6], 1
    %126 = vsyncpa [#allocation4], 1

</llo_original>
